<compile_context>
chip_gen: v7x
topology: tpu7x:2x2x1
jax: 0.10.0
libtpu: 0.0.40
codegen_flags: <defaults>
</compile_context>

<pallas_src>
import jax
import jax.numpy as jnp
from jax import lax
from jax.experimental import pallas as pl
from jax.experimental.pallas import tpu as pltpu

# TODO(synk): tol-based early stopping of the implicit fixed point is not
# implemented; we run a fixed number of Picard iterations instead.
N_FIXED_POINT_ITERS = 16


def _round_up(x, m):
    return (x + m - 1) // m * m


def gnn_forward_kernel(beta_ref, x_ref, a_ref, w_enc_ref, b_enc_ref,
                       w_bias_ref, w_dec_ref, b_dec_ref, out_ref):
    beta = beta_ref[0]  # scalar from SMEM

    # dropout (inference) == identity.
    # enc: h = x @ W_enc + b_enc
    h = jnp.dot(x_ref[...], w_enc_ref[...],
                preferred_element_type=jnp.float32) + b_enc_ref[...]

    # Input injection, scaled by beta ONCE (loop-invariant):
    #   beta_b = beta * (h @ W_bias)
    beta_b = beta * jnp.dot(h, w_bias_ref[...],
                            preferred_element_type=jnp.float32)

    # Adjacency: gamma already folded in (glue), stored as bf16.
    a = a_ref[...]

    # Picard iteration of z = ReLU(A z + beta_b)  (A := gamma * A_orig)
    def body(_, z):
        prop = jnp.dot(a, z.astype(jnp.bfloat16),
                       preferred_element_type=jnp.float32)
        return jnp.maximum(prop + beta_b, 0.0)

    z = lax.fori_loop(0, N_FIXED_POINT_ITERS, body, jnp.zeros_like(h),
                      unroll=True)
    # self.act (ReLU) after the implicit layer is idempotent here: the last
    # Picard step already ends in ReLU, so it is omitted.

    # dec: y = z @ W_dec + b_dec
    y = jnp.dot(z, w_dec_ref[...],
                preferred_element_type=jnp.float32) + b_dec_ref[...]
    out_ref[...] = y.astype(out_ref.dtype)


def model_forward(x, edge_index, edge_weight, params):
    n_nodes, c_in = x.shape
    hid = params["w_enc"].shape[1]
    c_out = params["w_dec"].shape[1]

    # Padded (lane/sublane aligned) sizes.
    n_pad = _round_up(n_nodes, 16)       # bf16 sublane packing
    cin_pad = _round_up(c_in, 128)
    hid_pad = _round_up(hid, 128)
    cout_pad = _round_up(c_out, 128)

    gamma = jnp.asarray(params["gamma"], jnp.float32).reshape(())
    beta = jnp.asarray(params["beta"], jnp.float32).reshape((1,))

    # Glue: densify the graph with A[dst, src] = gamma * w (PyG message-passing
    # orientation), scatter-adding duplicate edges.  Cast to bf16: A is the
    # largest operand and is read once per Picard iteration.
    # TODO(synk): for node counts where A no longer fits VMEM, tile A over
    # (row, col) blocks with a grid / emit_pipeline (or a sparse SpMM path)
    # instead of this single-resident-block design.
    src, dst = edge_index[0], edge_index[1]
    a = jnp.zeros((n_pad, n_pad), jnp.float32).at[dst, src].add(
        edge_weight * gamma).astype(jnp.bfloat16)

    # Zero-padded operands (pad rows/cols contribute exact zeros everywhere).
    x_p = jnp.zeros((n_pad, cin_pad), jnp.float32).at[:n_nodes, :c_in].set(x)
    w_enc = jnp.zeros((cin_pad, hid_pad), jnp.float32).at[:c_in, :hid].set(
        params["w_enc"])
    b_enc = jnp.zeros((1, hid_pad), jnp.float32).at[:, :hid].set(
        params["b_enc"])
    w_bias = jnp.zeros((hid_pad, hid_pad), jnp.float32).at[:hid, :hid].set(
        params["w_bias"])
    w_dec = jnp.zeros((hid_pad, cout_pad), jnp.float32).at[:hid, :c_out].set(
        params["w_dec"])
    b_dec = jnp.zeros((1, cout_pad), jnp.float32).at[:, :c_out].set(
        params["b_dec"])

    vmem = pl.BlockSpec(memory_space=pltpu.MemorySpace.VMEM)
    smem = pl.BlockSpec(memory_space=pltpu.MemorySpace.SMEM)

    # Scoped-VMEM budget: A (bf16) + f32 weights + a few N x H working arrays,
    # with 2x headroom; clamp to stay under the smallest physical VMEM (v7x).
    needed = (a.size * 2
              + (x_p.size + w_enc.size + w_bias.size + w_dec.size) * 4
              + 4 * n_pad * hid_pad * 4
              + 2 * n_pad * cout_pad * 4)
    vmem_limit = int(min(60 * 2**20, max(16 * 2**20, 2 * needed)))

    out_p = pl.pallas_call(
        gnn_forward_kernel,
        out_shape=jax.ShapeDtypeStruct((n_pad, cout_pad), jnp.float32),
        in_specs=[smem, vmem, vmem, vmem, vmem, vmem, vmem, vmem],
        out_specs=vmem,
        compiler_params=pltpu.CompilerParams(vmem_limit_bytes=vmem_limit),
    )(beta, x_p, a, w_enc, b_enc, w_bias, w_dec, b_dec)

    # Slice off padding.
    return out_p[:n_nodes, :c_out]


if __name__ == "__main__":
    key = jax.random.PRNGKey(0)
    N, C_IN, HID, C_OUT, E = 16, 8, 32, 4, 48
    ks = jax.random.split(key, 10)

    x = jax.random.normal(ks[0], (N, C_IN), jnp.float32)
    src = jax.random.randint(ks[1], (E,), 0, N)
    dst = jax.random.randint(ks[2], (E,), 0, N)
    edge_index = jnp.stack([src, dst])
    # Small positive weights -> contractive propagation (convergent fixed point).
    edge_weight = jax.random.uniform(ks[3], (E,), jnp.float32) / float(N)

    # Deterministic parameters (PyTorch Linear weights pre-transposed to [in, out]).
    params = {
        "w_enc": jax.random.normal(ks[4], (C_IN, HID), jnp.float32) / jnp.sqrt(float(C_IN)),
        "b_enc": jax.random.normal(ks[5], (1, HID), jnp.float32) * 0.1,
        "w_bias": jax.random.normal(ks[6], (HID, HID), jnp.float32) / jnp.sqrt(float(HID)),
        "w_dec": jax.random.normal(ks[7], (HID, C_OUT), jnp.float32) / jnp.sqrt(float(HID)),
        "b_dec": jax.random.normal(ks[8], (1, C_OUT), jnp.float32) * 0.1,
        "beta": jnp.array([[0.9]], jnp.float32),    # beta_init
        "gamma": jnp.array([[0.5]], jnp.float32),   # gamma_init
    }

    out = model_forward(x, edge_index, edge_weight, params)
    jax.block_until_ready(out)
    assert out.shape == (N, C_OUT)
    assert bool(jnp.all(jnp.isfinite(out)))
    print("KERNEL_OK")
</pallas_src>

<mosaic_0001>
module attributes {stable_mosaic.version = 11 : i64} {
  func.func @gnn_forward_kernel(%arg0: memref<1xf32, #tpu.memory_space<smem>>, %arg1: memref<16x128xf32, #tpu.memory_space<vmem>>, %arg2: memref<16x16xbf16, #tpu.memory_space<vmem>>, %arg3: memref<128x128xf32, #tpu.memory_space<vmem>>, %arg4: memref<1x128xf32, #tpu.memory_space<vmem>>, %arg5: memref<128x128xf32, #tpu.memory_space<vmem>>, %arg6: memref<128x128xf32, #tpu.memory_space<vmem>>, %arg7: memref<1x128xf32, #tpu.memory_space<vmem>>, %arg8: memref<16x128xf32, #tpu.memory_space<vmem>>) attributes {dimension_semantics = [], scalar_prefetch = 0 : i64, scratch_operands = 0 : i64, tpu.core_type = #tpu.core_type<tc>} {
    %c0 = arith.constant 0 : index
    %0 = memref.load %arg0[%c0] : memref<1xf32, #tpu.memory_space<smem>>
    %c0_0 = arith.constant 0 : index
    %c0_1 = arith.constant 0 : index
    %1 = vector.load %arg1[%c0_0, %c0_1] : memref<16x128xf32, #tpu.memory_space<vmem>>, vector<16x128xf32>
    %c0_2 = arith.constant 0 : index
    %c0_3 = arith.constant 0 : index
    %2 = vector.load %arg3[%c0_2, %c0_3] : memref<128x128xf32, #tpu.memory_space<vmem>>, vector<128x128xf32>
    %cst = arith.constant dense<0.000000e+00> : vector<16x128xf32>
    %3 = tpu.matmul %1, %2, %cst {dimension_numbers = #tpu.dot_dimension_numbers<[1], [0], [0], [1], [0, 0, 1, 1], [], []>} : vector<16x128xf32>, vector<128x128xf32>, vector<16x128xf32> -> vector<16x128xf32>
    %c0_4 = arith.constant 0 : index
    %c0_5 = arith.constant 0 : index
    %4 = vector.load %arg4[%c0_4, %c0_5] : memref<1x128xf32, #tpu.memory_space<vmem>>, vector<1x128xf32>
    %5 = vector.broadcast %4 : vector<1x128xf32> to vector<16x128xf32>
    %6 = arith.addf %3, %5 : vector<16x128xf32>
    %c0_6 = arith.constant 0 : index
    %c0_7 = arith.constant 0 : index
    %7 = vector.load %arg5[%c0_6, %c0_7] : memref<128x128xf32, #tpu.memory_space<vmem>>, vector<128x128xf32>
    %cst_8 = arith.constant dense<0.000000e+00> : vector<16x128xf32>
    %8 = tpu.matmul %6, %7, %cst_8 {dimension_numbers = #tpu.dot_dimension_numbers<[1], [0], [0], [1], [0, 0, 1, 1], [], []>} : vector<16x128xf32>, vector<128x128xf32>, vector<16x128xf32> -> vector<16x128xf32>
    %9 = vector.broadcast %0 : f32 to vector<16x128xf32>
    %10 = arith.mulf %9, %8 : vector<16x128xf32>
    %c0_9 = arith.constant 0 : index
    %c0_10 = arith.constant 0 : index
    %11 = vector.load %arg2[%c0_9, %c0_10] : memref<16x16xbf16, #tpu.memory_space<vmem>>, vector<16x16xbf16>
    %cst_11 = arith.constant 0.000000e+00 : f32
    %12 = vector.broadcast %cst_11 : f32 to vector<16x128xf32>
    %c0_i32 = arith.constant 0 : i32
    %13 = arith.truncf %12 : vector<16x128xf32> to vector<16x128xbf16>
    %cst_12 = arith.constant dense<0.000000e+00> : vector<16x128xf32>
    %14 = tpu.matmul %11, %13, %cst_12 {dimension_numbers = #tpu.dot_dimension_numbers<[1], [0], [0], [1], [0, 0, 1, 1], [], []>} : vector<16x16xbf16>, vector<16x128xbf16>, vector<16x128xf32> -> vector<16x128xf32>
    %15 = arith.addf %14, %10 : vector<16x128xf32>
    %cst_13 = arith.constant 0.000000e+00 : f32
    %16 = vector.broadcast %cst_13 : f32 to vector<16x128xf32>
    %17 = arith.maximumf %15, %16 : vector<16x128xf32>
    %c1_i32 = arith.constant 1 : i32
    %18 = arith.truncf %17 : vector<16x128xf32> to vector<16x128xbf16>
    %cst_14 = arith.constant dense<0.000000e+00> : vector<16x128xf32>
    %19 = tpu.matmul %11, %18, %cst_14 {dimension_numbers = #tpu.dot_dimension_numbers<[1], [0], [0], [1], [0, 0, 1, 1], [], []>} : vector<16x16xbf16>, vector<16x128xbf16>, vector<16x128xf32> -> vector<16x128xf32>
    %20 = arith.addf %19, %10 : vector<16x128xf32>
    %cst_15 = arith.constant 0.000000e+00 : f32
    %21 = vector.broadcast %cst_15 : f32 to vector<16x128xf32>
    %22 = arith.maximumf %20, %21 : vector<16x128xf32>
    %c2_i32 = arith.constant 2 : i32
    %23 = arith.truncf %22 : vector<16x128xf32> to vector<16x128xbf16>
    %cst_16 = arith.constant dense<0.000000e+00> : vector<16x128xf32>
    %24 = tpu.matmul %11, %23, %cst_16 {dimension_numbers = #tpu.dot_dimension_numbers<[1], [0], [0], [1], [0, 0, 1, 1], [], []>} : vector<16x16xbf16>, vector<16x128xbf16>, vector<16x128xf32> -> vector<16x128xf32>
    %25 = arith.addf %24, %10 : vector<16x128xf32>
    %cst_17 = arith.constant 0.000000e+00 : f32
    %26 = vector.broadcast %cst_17 : f32 to vector<16x128xf32>
    %27 = arith.maximumf %25, %26 : vector<16x128xf32>
    %c3_i32 = arith.constant 3 : i32
    %28 = arith.truncf %27 : vector<16x128xf32> to vector<16x128xbf16>
    %cst_18 = arith.constant dense<0.000000e+00> : vector<16x128xf32>
    %29 = tpu.matmul %11, %28, %cst_18 {dimension_numbers = #tpu.dot_dimension_numbers<[1], [0], [0], [1], [0, 0, 1, 1], [], []>} : vector<16x16xbf16>, vector<16x128xbf16>, vector<16x128xf32> -> vector<16x128xf32>
    %30 = arith.addf %29, %10 : vector<16x128xf32>
    %cst_19 = arith.constant 0.000000e+00 : f32
    %31 = vector.broadcast %cst_19 : f32 to vector<16x128xf32>
    %32 = arith.maximumf %30, %31 : vector<16x128xf32>
    %c4_i32 = arith.constant 4 : i32
    %33 = arith.truncf %32 : vector<16x128xf32> to vector<16x128xbf16>
    %cst_20 = arith.constant dense<0.000000e+00> : vector<16x128xf32>
    %34 = tpu.matmul %11, %33, %cst_20 {dimension_numbers = #tpu.dot_dimension_numbers<[1], [0], [0], [1], [0, 0, 1, 1], [], []>} : vector<16x16xbf16>, vector<16x128xbf16>, vector<16x128xf32> -> vector<16x128xf32>
    %35 = arith.addf %34, %10 : vector<16x128xf32>
    %cst_21 = arith.constant 0.000000e+00 : f32
    %36 = vector.broadcast %cst_21 : f32 to vector<16x128xf32>
    %37 = arith.maximumf %35, %36 : vector<16x128xf32>
    %c5_i32 = arith.constant 5 : i32
    %38 = arith.truncf %37 : vector<16x128xf32> to vector<16x128xbf16>
    %cst_22 = arith.constant dense<0.000000e+00> : vector<16x128xf32>
    %39 = tpu.matmul %11, %38, %cst_22 {dimension_numbers = #tpu.dot_dimension_numbers<[1], [0], [0], [1], [0, 0, 1, 1], [], []>} : vector<16x16xbf16>, vector<16x128xbf16>, vector<16x128xf32> -> vector<16x128xf32>
    %40 = arith.addf %39, %10 : vector<16x128xf32>
    %cst_23 = arith.constant 0.000000e+00 : f32
    %41 = vector.broadcast %cst_23 : f32 to vector<16x128xf32>
    %42 = arith.maximumf %40, %41 : vector<16x128xf32>
    %c6_i32 = arith.constant 6 : i32
    %43 = arith.truncf %42 : vector<16x128xf32> to vector<16x128xbf16>
    %cst_24 = arith.constant dense<0.000000e+00> : vector<16x128xf32>
    %44 = tpu.matmul %11, %43, %cst_24 {dimension_numbers = #tpu.dot_dimension_numbers<[1], [0], [0], [1], [0, 0, 1, 1], [], []>} : vector<16x16xbf16>, vector<16x128xbf16>, vector<16x128xf32> -> vector<16x128xf32>
    %45 = arith.addf %44, %10 : vector<16x128xf32>
    %cst_25 = arith.constant 0.000000e+00 : f32
    %46 = vector.broadcast %cst_25 : f32 to vector<16x128xf32>
    %47 = arith.maximumf %45, %46 : vector<16x128xf32>
    %c7_i32 = arith.constant 7 : i32
    %48 = arith.truncf %47 : vector<16x128xf32> to vector<16x128xbf16>
    %cst_26 = arith.constant dense<0.000000e+00> : vector<16x128xf32>
    %49 = tpu.matmul %11, %48, %cst_26 {dimension_numbers = #tpu.dot_dimension_numbers<[1], [0], [0], [1], [0, 0, 1, 1], [], []>} : vector<16x16xbf16>, vector<16x128xbf16>, vector<16x128xf32> -> vector<16x128xf32>
    %50 = arith.addf %49, %10 : vector<16x128xf32>
    %cst_27 = arith.constant 0.000000e+00 : f32
    %51 = vector.broadcast %cst_27 : f32 to vector<16x128xf32>
    %52 = arith.maximumf %50, %51 : vector<16x128xf32>
    %c8_i32 = arith.constant 8 : i32
    %53 = arith.truncf %52 : vector<16x128xf32> to vector<16x128xbf16>
    %cst_28 = arith.constant dense<0.000000e+00> : vector<16x128xf32>
    %54 = tpu.matmul %11, %53, %cst_28 {dimension_numbers = #tpu.dot_dimension_numbers<[1], [0], [0], [1], [0, 0, 1, 1], [], []>} : vector<16x16xbf16>, vector<16x128xbf16>, vector<16x128xf32> -> vector<16x128xf32>
    %55 = arith.addf %54, %10 : vector<16x128xf32>
    %cst_29 = arith.constant 0.000000e+00 : f32
    %56 = vector.broadcast %cst_29 : f32 to vector<16x128xf32>
    %57 = arith.maximumf %55, %56 : vector<16x128xf32>
    %c9_i32 = arith.constant 9 : i32
    %58 = arith.truncf %57 : vector<16x128xf32> to vector<16x128xbf16>
    %cst_30 = arith.constant dense<0.000000e+00> : vector<16x128xf32>
    %59 = tpu.matmul %11, %58, %cst_30 {dimension_numbers = #tpu.dot_dimension_numbers<[1], [0], [0], [1], [0, 0, 1, 1], [], []>} : vector<16x16xbf16>, vector<16x128xbf16>, vector<16x128xf32> -> vector<16x128xf32>
    %60 = arith.addf %59, %10 : vector<16x128xf32>
    %cst_31 = arith.constant 0.000000e+00 : f32
    %61 = vector.broadcast %cst_31 : f32 to vector<16x128xf32>
    %62 = arith.maximumf %60, %61 : vector<16x128xf32>
    %c10_i32 = arith.constant 10 : i32
    %63 = arith.truncf %62 : vector<16x128xf32> to vector<16x128xbf16>
    %cst_32 = arith.constant dense<0.000000e+00> : vector<16x128xf32>
    %64 = tpu.matmul %11, %63, %cst_32 {dimension_numbers = #tpu.dot_dimension_numbers<[1], [0], [0], [1], [0, 0, 1, 1], [], []>} : vector<16x16xbf16>, vector<16x128xbf16>, vector<16x128xf32> -> vector<16x128xf32>
    %65 = arith.addf %64, %10 : vector<16x128xf32>
    %cst_33 = arith.constant 0.000000e+00 : f32
    %66 = vector.broadcast %cst_33 : f32 to vector<16x128xf32>
    %67 = arith.maximumf %65, %66 : vector<16x128xf32>
    %c11_i32 = arith.constant 11 : i32
    %68 = arith.truncf %67 : vector<16x128xf32> to vector<16x128xbf16>
    %cst_34 = arith.constant dense<0.000000e+00> : vector<16x128xf32>
    %69 = tpu.matmul %11, %68, %cst_34 {dimension_numbers = #tpu.dot_dimension_numbers<[1], [0], [0], [1], [0, 0, 1, 1], [], []>} : vector<16x16xbf16>, vector<16x128xbf16>, vector<16x128xf32> -> vector<16x128xf32>
    %70 = arith.addf %69, %10 : vector<16x128xf32>
    %cst_35 = arith.constant 0.000000e+00 : f32
    %71 = vector.broadcast %cst_35 : f32 to vector<16x128xf32>
    %72 = arith.maximumf %70, %71 : vector<16x128xf32>
    %c12_i32 = arith.constant 12 : i32
    %73 = arith.truncf %72 : vector<16x128xf32> to vector<16x128xbf16>
    %cst_36 = arith.constant dense<0.000000e+00> : vector<16x128xf32>
    %74 = tpu.matmul %11, %73, %cst_36 {dimension_numbers = #tpu.dot_dimension_numbers<[1], [0], [0], [1], [0, 0, 1, 1], [], []>} : vector<16x16xbf16>, vector<16x128xbf16>, vector<16x128xf32> -> vector<16x128xf32>
    %75 = arith.addf %74, %10 : vector<16x128xf32>
    %cst_37 = arith.constant 0.000000e+00 : f32
    %76 = vector.broadcast %cst_37 : f32 to vector<16x128xf32>
    %77 = arith.maximumf %75, %76 : vector<16x128xf32>
    %c13_i32 = arith.constant 13 : i32
    %78 = arith.truncf %77 : vector<16x128xf32> to vector<16x128xbf16>
    %cst_38 = arith.constant dense<0.000000e+00> : vector<16x128xf32>
    %79 = tpu.matmul %11, %78, %cst_38 {dimension_numbers = #tpu.dot_dimension_numbers<[1], [0], [0], [1], [0, 0, 1, 1], [], []>} : vector<16x16xbf16>, vector<16x128xbf16>, vector<16x128xf32> -> vector<16x128xf32>
    %80 = arith.addf %79, %10 : vector<16x128xf32>
    %cst_39 = arith.constant 0.000000e+00 : f32
    %81 = vector.broadcast %cst_39 : f32 to vector<16x128xf32>
    %82 = arith.maximumf %80, %81 : vector<16x128xf32>
    %c14_i32 = arith.constant 14 : i32
    %83 = arith.truncf %82 : vector<16x128xf32> to vector<16x128xbf16>
    %cst_40 = arith.constant dense<0.000000e+00> : vector<16x128xf32>
    %84 = tpu.matmul %11, %83, %cst_40 {dimension_numbers = #tpu.dot_dimension_numbers<[1], [0], [0], [1], [0, 0, 1, 1], [], []>} : vector<16x16xbf16>, vector<16x128xbf16>, vector<16x128xf32> -> vector<16x128xf32>
    %85 = arith.addf %84, %10 : vector<16x128xf32>
    %cst_41 = arith.constant 0.000000e+00 : f32
    %86 = vector.broadcast %cst_41 : f32 to vector<16x128xf32>
    %87 = arith.maximumf %85, %86 : vector<16x128xf32>
    %c15_i32 = arith.constant 15 : i32
    %88 = arith.truncf %87 : vector<16x128xf32> to vector<16x128xbf16>
    %cst_42 = arith.constant dense<0.000000e+00> : vector<16x128xf32>
    %89 = tpu.matmul %11, %88, %cst_42 {dimension_numbers = #tpu.dot_dimension_numbers<[1], [0], [0], [1], [0, 0, 1, 1], [], []>} : vector<16x16xbf16>, vector<16x128xbf16>, vector<16x128xf32> -> vector<16x128xf32>
    %90 = arith.addf %89, %10 : vector<16x128xf32>
    %cst_43 = arith.constant 0.000000e+00 : f32
    %91 = vector.broadcast %cst_43 : f32 to vector<16x128xf32>
    %92 = arith.maximumf %90, %91 : vector<16x128xf32>
    %c0_44 = arith.constant 0 : index
    %c0_45 = arith.constant 0 : index
    %93 = vector.load %arg6[%c0_44, %c0_45] : memref<128x128xf32, #tpu.memory_space<vmem>>, vector<128x128xf32>
    %cst_46 = arith.constant dense<0.000000e+00> : vector<16x128xf32>
    %94 = tpu.matmul %92, %93, %cst_46 {dimension_numbers = #tpu.dot_dimension_numbers<[1], [0], [0], [1], [0, 0, 1, 1], [], []>} : vector<16x128xf32>, vector<128x128xf32>, vector<16x128xf32> -> vector<16x128xf32>
    %c0_47 = arith.constant 0 : index
    %c0_48 = arith.constant 0 : index
    %95 = vector.load %arg7[%c0_47, %c0_48] : memref<1x128xf32, #tpu.memory_space<vmem>>, vector<1x128xf32>
    %96 = vector.broadcast %95 : vector<1x128xf32> to vector<16x128xf32>
    %97 = arith.addf %94, %96 : vector<16x128xf32>
    %c0_49 = arith.constant 0 : index
    %c0_50 = arith.constant 0 : index
    %98 = vector.load %arg8[%c0_49, %c0_50] : memref<16x128xf32, #tpu.memory_space<vmem>>, vector<16x128xf32>
    tpu.vector_store %arg8[%c0_49, %c0_50], %97 {strides = array<i32>} : memref<16x128xf32, #tpu.memory_space<vmem>>, vector<16x128xf32>,
    return
  }
}

</mosaic_0001>

<llo_original>
// kernel: tpu_custom_call.1
$region0: #{tpu_custom_call.1}
  #allocation0 [shape = 'u32[]', space=smem, size = 0x4, offset = 0x4, fixed_abs, tag = 'smem constant byte address 0x4 - core index']
  #allocation1 [shape = 'u32[144,128]{1,0:T(1,128)}', space=vmem, size = 0x12000, scoped, tag = 'internal scratch']
  #allocation2 [shape = 'f32[1]{0:T(128)S(6)}', space=smem, size = 0x200, scoped, tag = 'scoped memory for tpu_custom_call.1']
  %s0 = inlined_call_operand.<no memory space> [shape: f32[1], index: 0, kind: input, shape index: {}]
  %s1 = inlined_call_operand.hbm [shape: f32[16,128], index: 1, kind: input, shape index: {}]
  %s2 = inlined_call_operand.hbm [shape: bf16[16,16], index: 2, kind: input, shape index: {}]
  %s3 = inlined_call_operand.hbm [shape: f32[128,128], index: 3, kind: input, shape index: {}]
  %s4 = inlined_call_operand.vmem [shape: f32[1,128], index: 4, kind: input, shape index: {}]
  %s5 = inlined_call_operand.hbm [shape: f32[128,128], index: 5, kind: input, shape index: {}]
  %s6 = inlined_call_operand.hbm [shape: f32[128,128], index: 6, kind: input, shape index: {}]
  %s7 = inlined_call_operand.vmem [shape: f32[1,128], index: 7, kind: input, shape index: {}]
  %s8 = inlined_call_operand.hbm [shape: f32[16,128], index: 8, kind: output, shape index: {}]
  %s9 = sld [smem:[#allocation0]]
  $region62: #{tpu_custom_call.1} parent=0
    _
  %s11 = ssub.s32 1, %s9
  %s12 = scalar_select 0, %s11, %s9
  %13 = sst [smem:[#allocation2]] %s0
  $region1: #{tpu_custom_call.1} parent=0
    #allocation3 [shape = 'u8[8192]{0}', space=vmem, size = 0x2000, scoped, tag = 'input window, operand 1, single buffered']
    #allocation4 [shape = 's32[1]{0}', space=sflag, size = 0x4, scoped, tag = 'scoped memory for tpu_custom_call.1']
    #allocation5 [shape = 's32[1]{0}', space=sflag, size = 0x4, scoped, tag = 'scoped memory for tpu_custom_call.1']
    #allocation6 [shape = 'u8[4096]{0}', space=vmem, size = 0x1000, scoped, tag = 'input window, operand 2, single buffered']
    #allocation7 [shape = 's32[1]{0}', space=sflag, size = 0x4, scoped, tag = 'scoped memory for tpu_custom_call.1']
    #allocation8 [shape = 'u8[65536]{0}', space=vmem, size = 0x10000, scoped, tag = 'input window, operand 3, single buffered']
    #allocation9 [shape = 'u8[65536]{0}', space=vmem, size = 0x10000, scoped, tag = 'input window, operand 5, single buffered']
    #allocation10 [shape = 's32[1]{0}', space=sflag, size = 0x4, scoped, tag = 'scoped memory for tpu_custom_call.1']
    #allocation11 [shape = 'u8[65536]{0}', space=vmem, size = 0x10000, scoped, tag = 'input window, operand 6, single buffered']
    #allocation12 [shape = 'u8[8192]{0}', space=vmem, size = 0x2000, scoped, tag = 'output window, operand 0, single buffered']
    %14 = vsyncpa [#allocation4], 0
    %15 = vsyncpa [#allocation7], 0
    %16 = vsyncpa [#allocation10], 0
    %17 = vsyncpa [#allocation5], 0
    // Predicated region
    $region2: #{tpu_custom_call.1} parent=1 // pred_check
      _
    $region3: #{tpu_custom_call.1} parent=1 // pred_check_branch
      %19 = sbr.rel (0) target = $region5
    $region4: #{tpu_custom_call.1} parent=1 // pred_region
      _
    $region5: #{tpu_custom_call.1} parent=1 // pred_fallthru
      _
    // Predicated region
    $region6: #{tpu_custom_call.1} parent=1 // pred_check
      _
    $region7: #{tpu_custom_call.1} parent=1 // pred_check_branch
      %21 = sbr.rel (0) target = $region9
    $region8: #{tpu_custom_call.1} parent=1 // pred_region
      %s23 = ssub.s32 256, 256
      %24 = vsyncadd [#allocation4], %s23
      %s25 = sshll.u32 [#allocation3], 4
      %s26 = int_to_ptr.vmem [resolvable:$true] %s25
      %31 = dma.hbm_to_vmem [thread:$0]  %s1, 256, %s26, [#allocation4], 128, 128, 8
    $region9: #{tpu_custom_call.1} parent=1 // pred_fallthru
      _
    // Predicated region
    $region10: #{tpu_custom_call.1} parent=1 // pred_check
      _
    $region11: #{tpu_custom_call.1} parent=1 // pred_check_branch
      %33 = sbr.rel (0) target = $region13
    $region12: #{tpu_custom_call.1} parent=1 // pred_region
      %s35 = ssub.s32 128, 128
      %36 = vsyncadd [#allocation7], %s35
      %s37 = sshll.u32 [#allocation6], 4
      %s38 = int_to_ptr.vmem [resolvable:$true] %s37
      %43 = dma.hbm_to_vmem [thread:$0]  %s2, 128, %s38, [#allocation7], 64, 64, 4
    $region13: #{tpu_custom_call.1} parent=1 // pred_fallthru
      _
    // Predicated region
    $region14: #{tpu_custom_call.1} parent=1 // pred_check
      _
    $region15: #{tpu_custom_call.1} parent=1 // pred_check_branch
      %45 = sbr.rel (0) target = $region17
    $region16: #{tpu_custom_call.1} parent=1 // pred_region
      %s47 = ssub.s32 2048, 2048
      %48 = vsyncadd [#allocation7], %s47
      %s49 = sshll.u32 [#allocation8], 4
      %s50 = int_to_ptr.vmem [resolvable:$true] %s49
      %55 = dma.hbm_to_vmem [thread:$0]  %s3, 2048, %s50, [#allocation7], 128, 128, 8
    $region17: #{tpu_custom_call.1} parent=1 // pred_fallthru
      _
    // Predicated region
    $region18: #{tpu_custom_call.1} parent=1 // pred_check
      _
    $region19: #{tpu_custom_call.1} parent=1 // pred_check_branch
      %57 = sbr.rel (0) target = $region21
    $region20: #{tpu_custom_call.1} parent=1 // pred_region
      _
    $region21: #{tpu_custom_call.1} parent=1 // pred_fallthru
      _
    // Predicated region
    $region22: #{tpu_custom_call.1} parent=1 // pred_check
      _
    $region23: #{tpu_custom_call.1} parent=1 // pred_check_branch
      %59 = sbr.rel (0) target = $region25
    $region24: #{tpu_custom_call.1} parent=1 // pred_region
      %s61 = ssub.s32 2048, 2048
      %62 = vsyncadd [#allocation10], %s61
      %s63 = sshll.u32 [#allocation9], 4
      %s64 = int_to_ptr.vmem [resolvable:$true] %s63
      %69 = dma.hbm_to_vmem [thread:$0]  %s5, 2048, %s64, [#allocation10], 128, 128, 8
    $region25: #{tpu_custom_call.1} parent=1 // pred_fallthru
      _
    // Predicated region
    $region26: #{tpu_custom_call.1} parent=1 // pred_check
      _
    $region27: #{tpu_custom_call.1} parent=1 // pred_check_branch
      %71 = sbr.rel (0) target = $region29
    $region28: #{tpu_custom_call.1} parent=1 // pred_region
      %s73 = ssub.s32 2048, 2048
      %74 = vsyncadd [#allocation10], %s73
      %s75 = sshll.u32 [#allocation11], 4
      %s76 = int_to_ptr.vmem [resolvable:$true] %s75
      %81 = dma.hbm_to_vmem [thread:$0]  %s6, 2048, %s76, [#allocation10], 128, 128, 8
    $region29: #{tpu_custom_call.1} parent=1 // pred_fallthru
      _
    // Predicated region
    $region30: #{tpu_custom_call.1} parent=1 // pred_check
      _
    $region31: #{tpu_custom_call.1} parent=1 // pred_check_branch
      %83 = sbr.rel (0) target = $region33
    $region32: #{tpu_custom_call.1} parent=1 // pred_region
      _
    $region33: #{tpu_custom_call.1} parent=1 // pred_fallthru
      _
    // Predicated region
    $region34: #{tpu_custom_call.1} parent=1 // pred_check
      _
    $region35: #{tpu_custom_call.1} parent=1 // pred_check_branch
      %85 = sbr.rel (0) target = $region37
    $region36: #{tpu_custom_call.1} parent=1 // pred_region
      %86 = dma.done [#allocation4], 256
    $region37: #{tpu_custom_call.1} parent=1 // pred_fallthru
      _
    // Predicated region
    $region38: #{tpu_custom_call.1} parent=1 // pred_check
      _
    $region39: #{tpu_custom_call.1} parent=1 // pred_check_branch
      %88 = sbr.rel (0) target = $region41
    $region40: #{tpu_custom_call.1} parent=1 // pred_region
      %89 = dma.done [#allocation7], 128
    $region41: #{tpu_custom_call.1} parent=1 // pred_fallthru
      _
    // Predicated region
    $region42: #{tpu_custom_call.1} parent=1 // pred_check
      _
    $region43: #{tpu_custom_call.1} parent=1 // pred_check_branch
      %91 = sbr.rel (0) target = $region45
    $region44: #{tpu_custom_call.1} parent=1 // pred_region
      %92 = dma.done [#allocation7], 2048
    $region45: #{tpu_custom_call.1} parent=1 // pred_fallthru
      _
    // Predicated region
    $region46: #{tpu_custom_call.1} parent=1 // pred_check
      _
    $region47: #{tpu_custom_call.1} parent=1 // pred_check_branch
      %94 = sbr.rel (0) target = $region49
    $region48: #{tpu_custom_call.1} parent=1 // pred_region
      %95 = dma.done [#allocation10], 2048
    $region49: #{tpu_custom_call.1} parent=1 // pred_fallthru
      _
    // Predicated region
    $region50: #{tpu_custom_call.1} parent=1 // pred_check
      _
    $region51: #{tpu_custom_call.1} parent=1 // pred_check_branch
      %97 = sbr.rel (0) target = $region53
    $region52: #{tpu_custom_call.1} parent=1 // pred_region
      %98 = dma.done [#allocation10], 2048
    $region53: #{tpu_custom_call.1} parent=1 // pred_fallthru
      _
    %s100 = sld [smem:[#allocation2]]
    %v101 = vld [vmem:[#allocation3] sm:$0xff]
    %v102 = vld [vmem:[#allocation3 + $0x8] sm:$0xff]
    %v103 = vld [vmem:[#allocation8] sm:$0xff]
    %v104 = vld [vmem:[#allocation8 + $0x8] sm:$0xff]
    %v105 = vld [vmem:[#allocation8 + $0x10] sm:$0xff]
    %v106 = vld [vmem:[#allocation8 + $0x18] sm:$0xff]
    %v107 = vld [vmem:[#allocation8 + $0x20] sm:$0xff]
    %v108 = vld [vmem:[#allocation8 + $0x28] sm:$0xff]
    %v109 = vld [vmem:[#allocation8 + $0x30] sm:$0xff]
    %v110 = vld [vmem:[#allocation8 + $0x38] sm:$0xff]
    %v111 = vld [vmem:[#allocation8 + $0x40] sm:$0xff]
    %v112 = vld [vmem:[#allocation8 + $0x48] sm:$0xff]
    %v113 = vld [vmem:[#allocation8 + $0x50] sm:$0xff]
    %v114 = vld [vmem:[#allocation8 + $0x58] sm:$0xff]
    %v115 = vld [vmem:[#allocation8 + $0x60] sm:$0xff]
    %v116 = vld [vmem:[#allocation8 + $0x68] sm:$0xff]
    %v117 = vld [vmem:[#allocation8 + $0x70] sm:$0xff]
    %v118 = vld [vmem:[#allocation8 + $0x78] sm:$0xff]
    %v119 = vld [vmem:[%s4] sm:$0x1]
    %v121 = vlaneseq
    %v122 = vshrl.u32 %v121, 7
    %v123 = vsub.s32 0, %v122
    %v124 = vrot.slane %v119, %v123
    %126 = vmatprep.subr.mxu0 0.0
    %127 = vmatpush1.msra.mxu0 %v103
    %128 = vmatprep.subr.mxu0 0.0
    %129 = vmatpush1.msra.mxu0 %v104
    %130 = vmatprep.subr.mxu0 0.0
    %131 = vmatpush1.msra.mxu0 %v105
    %132 = vmatprep.subr.mxu0 0.0
    %133 = vmatpush1.msra.mxu0 %v106
    %134 = vmatprep.subr.mxu0 0.0
    %135 = vmatpush1.msra.mxu0 %v107
    %136 = vmatprep.subr.mxu0 0.0
    %137 = vmatpush1.msra.mxu0 %v108
    %138 = vmatprep.subr.mxu0 0.0
    %139 = vmatpush1.msra.mxu0 %v109
    %140 = vmatprep.subr.mxu0 0.0
    %141 = vmatpush1.msra.mxu0 %v110
    %142 = vmatprep.subr.mxu0 0.0
    %143 = vmatpush1.msra.mxu0 %v111
    %144 = vmatprep.subr.mxu0 0.0
    %145 = vmatpush1.msra.mxu0 %v112
    %146 = vmatprep.subr.mxu0 0.0
    %147 = vmatpush1.msra.mxu0 %v113
    %148 = vmatprep.subr.mxu0 0.0
    %149 = vmatpush1.msra.mxu0 %v114
    %150 = vmatprep.subr.mxu0 0.0
    %151 = vmatpush1.msra.mxu0 %v115
    %152 = vmatprep.subr.mxu0 0.0
    %153 = vmatpush1.msra.mxu0 %v116
    %154 = vmatprep.subr.mxu0 0.0
    %155 = vmatpush1.msra.mxu0 %v117
    %156 = vmatprep.subr.mxu0 0.0
    %157 = vmatpush1.msra.mxu0 %v118
    %158 = vmatprep.subr.mxu0 0.0
    %159 = vmatpush1.msra.mxu0 0.0
    %160 = vmatprep.subr.mxu0 0.0
    %161 = vmatpush1.msra.mxu0 0.0
    %162 = vmatprep.subr.mxu0 0.0
    %163 = vmatpush1.msra.mxu0 0.0
    %164 = vmatprep.subr.mxu0 0.0
    %165 = vmatpush1.msra.mxu0 0.0
    %166 = vmatprep.subr.mxu0 0.0
    %167 = vmatpush1.msra.mxu0 0.0
    %168 = vmatprep.subr.mxu0 0.0
    %169 = vmatpush1.msra.mxu0 0.0
    %170 = vmatprep.subr.mxu0 0.0
    %171 = vmatpush1.msra.mxu0 0.0
    %172 = vmatprep.subr.mxu0 0.0
    %173 = vmatpush1.msra.mxu0 0.0
    %174 = vmatprep.subr.mxu0 0.0
    %175 = vmatpush1.msra.mxu0 0.0
    %176 = vmatprep.subr.mxu0 0.0
    %177 = vmatpush1.msra.mxu0 0.0
    %178 = vmatprep.subr.mxu0 0.0
    %179 = vmatpush1.msra.mxu0 0.0
    %180 = vmatprep.subr.mxu0 0.0
    %181 = vmatpush1.msra.mxu0 0.0
    %182 = vmatprep.subr.mxu0 0.0
    %183 = vmatpush1.msra.mxu0 0.0
    %184 = vmatprep.subr.mxu0 0.0
    %185 = vmatpush1.msra.mxu0 0.0
    %186 = vmatprep.subr.mxu0 0.0
    %187 = vmatpush1.msra.mxu0 0.0
    %188 = vmatprep.subr.mxu0 0.0
    %189 = vmatpush1.msra.mxu0 0.0
    %190 = vmatprep.mubr.f32.mxu0 0.0
    %191 = vmatmul.mubr.f32.gmra.mrb[0].mxu0 %v101
    %v192 = vpop.f32.mrb[0].mxu0
    %v193 = vadd.f32 %v124, %v192
    %v194 = vpop.f32.mrb[0].mxu0
    %195 = vmatprep.mubr.f32.mxu0 0.0
    %196 = vmatmul.mubr.f32.gmra.mrb[0].mxu0 %v102
    %v197 = vpop.f32.mrb[0].mxu0
    %v198 = vadd.f32 %v124, %v197
    %v199 = vpop.f32.mrb[0].mxu0
    %200 = vdwg.mxu0
    %v201 = vld [vmem:[#allocation9] sm:$0xff]
    %v202 = vld [vmem:[#allocation9 + $0x8] sm:$0xff]
    %v203 = vld [vmem:[#allocation9 + $0x10] sm:$0xff]
    %v204 = vld [vmem:[#allocation9 + $0x18] sm:$0xff]
    %v205 = vld [vmem:[#allocation9 + $0x20] sm:$0xff]
    %v206 = vld [vmem:[#allocation9 + $0x28] sm:$0xff]
    %v207 = vld [vmem:[#allocation9 + $0x30] sm:$0xff]
    %v208 = vld [vmem:[#allocation9 + $0x38] sm:$0xff]
    %v209 = vld [vmem:[#allocation9 + $0x40] sm:$0xff]
    %v210 = vld [vmem:[#allocation9 + $0x48] sm:$0xff]
    %v211 = vld [vmem:[#allocation9 + $0x50] sm:$0xff]
    %v212 = vld [vmem:[#allocation9 + $0x58] sm:$0xff]
    %v213 = vld [vmem:[#allocation9 + $0x60] sm:$0xff]
    %v214 = vld [vmem:[#allocation9 + $0x68] sm:$0xff]
    %v215 = vld [vmem:[#allocation9 + $0x70] sm:$0xff]
    %v216 = vld [vmem:[#allocation9 + $0x78] sm:$0xff]
    %217 = vmatprep.subr.mxu0 0.0
    %218 = vmatpush1.msra.mxu0 %v201
    %219 = vmatprep.subr.mxu0 0.0
    %220 = vmatpush1.msra.mxu0 %v202
    %221 = vmatprep.subr.mxu0 0.0
    %222 = vmatpush1.msra.mxu0 %v203
    %223 = vmatprep.subr.mxu0 0.0
    %224 = vmatpush1.msra.mxu0 %v204
    %225 = vmatprep.subr.mxu0 0.0
    %226 = vmatpush1.msra.mxu0 %v205
    %227 = vmatprep.subr.mxu0 0.0
    %228 = vmatpush1.msra.mxu0 %v206
    %229 = vmatprep.subr.mxu0 0.0
    %230 = vmatpush1.msra.mxu0 %v207
    %231 = vmatprep.subr.mxu0 0.0
    %232 = vmatpush1.msra.mxu0 %v208
    %233 = vmatprep.subr.mxu0 0.0
    %234 = vmatpush1.msra.mxu0 %v209
    %235 = vmatprep.subr.mxu0 0.0
    %236 = vmatpush1.msra.mxu0 %v210
    %237 = vmatprep.subr.mxu0 0.0
    %238 = vmatpush1.msra.mxu0 %v211
    %239 = vmatprep.subr.mxu0 0.0
    %240 = vmatpush1.msra.mxu0 %v212
    %241 = vmatprep.subr.mxu0 0.0
    %242 = vmatpush1.msra.mxu0 %v213
    %243 = vmatprep.subr.mxu0 0.0
    %244 = vmatpush1.msra.mxu0 %v214
    %245 = vmatprep.subr.mxu0 0.0
    %246 = vmatpush1.msra.mxu0 %v215
    %247 = vmatprep.subr.mxu0 0.0
    %248 = vmatpush1.msra.mxu0 %v216
    %249 = vmatprep.subr.mxu0 0.0
    %250 = vmatpush1.msra.mxu0 0.0
    %251 = vmatprep.subr.mxu0 0.0
    %252 = vmatpush1.msra.mxu0 0.0
    %253 = vmatprep.subr.mxu0 0.0
    %254 = vmatpush1.msra.mxu0 0.0
    %255 = vmatprep.subr.mxu0 0.0
    %256 = vmatpush1.msra.mxu0 0.0
    %257 = vmatprep.subr.mxu0 0.0
    %258 = vmatpush1.msra.mxu0 0.0
    %259 = vmatprep.subr.mxu0 0.0
    %260 = vmatpush1.msra.mxu0 0.0
    %261 = vmatprep.subr.mxu0 0.0
    %262 = vmatpush1.msra.mxu0 0.0
    %263 = vmatprep.subr.mxu0 0.0
    %264 = vmatpush1.msra.mxu0 0.0
    %265 = vmatprep.subr.mxu0 0.0
    %266 = vmatpush1.msra.mxu0 0.0
    %267 = vmatprep.subr.mxu0 0.0
    %268 = vmatpush1.msra.mxu0 0.0
    %269 = vmatprep.subr.mxu0 0.0
    %270 = vmatpush1.msra.mxu0 0.0
    %271 = vmatprep.subr.mxu0 0.0
    %272 = vmatpush1.msra.mxu0 0.0
    %273 = vmatprep.subr.mxu0 0.0
    %274 = vmatpush1.msra.mxu0 0.0
    %275 = vmatprep.subr.mxu0 0.0
    %276 = vmatpush1.msra.mxu0 0.0
    %277 = vmatprep.subr.mxu0 0.0
    %278 = vmatpush1.msra.mxu0 0.0
    %279 = vmatprep.subr.mxu0 0.0
    %280 = vmatpush1.msra.mxu0 0.0
    %281 = vmatprep.mubr.f32.mxu0 0.0
    %282 = vmatmul.mubr.f32.gmra.mrb[0].mxu0 %v193
    %v283 = vpop.f32.mrb[0].mxu0
    %v284 = vadd.f32 0.0, %v283
    %v285 = vpop.f32.mrb[0].mxu0
    %286 = vmatprep.mubr.f32.mxu0 0.0
    %287 = vmatmul.mubr.f32.gmra.mrb[0].mxu0 %v198
    %v288 = vpop.f32.mrb[0].mxu0
    %v289 = vadd.f32 0.0, %v288
    %v290 = vpop.f32.mrb[0].mxu0
    %291 = vdwg.mxu0
    %v292 = vstv %s100
    %v293 = vmul.f32 %v292, %v284
    %v294 = vmul.f32 %v292, %v289
    %v295 = vld [vmem:[#allocation6] sm:$0xf]
    %v296 = vld [vmem:[#allocation6 + $0x4] sm:$0xf]
    %v299 = vunpack.c.l.b16 %v295
    %v300 = vunpack.c.l.b16 %v296
    %v301 = vpack.c.b16 %v300, %v299
    %vm302 = vcmask 130048
    %v304 = vsel %vm302, %v301, 0
    %306 = vmatprep.subr.bf16.mxu0 0
    %307 = vmatpush1.bf16.msra.mxu0 0
    %308 = vmatprep.subr.bf16.mxu0 0
    %309 = vmatpush1.bf16.msra.mxu0 0
    %310 = vmatprep.subr.bf16.mxu0 0
    %311 = vmatpush1.bf16.msra.mxu0 0
    %312 = vmatprep.subr.bf16.mxu0 0
    %313 = vmatpush1.bf16.msra.mxu0 0
    %314 = vmatprep.subr.bf16.mxu0 0
    %315 = vmatpush1.bf16.msra.mxu0 0
    %316 = vmatprep.subr.bf16.mxu0 0
    %317 = vmatpush1.bf16.msra.mxu0 0
    %318 = vmatprep.subr.bf16.mxu0 0
    %319 = vmatpush1.bf16.msra.mxu0 0
    %320 = vmatprep.subr.bf16.mxu0 0
    %321 = vmatpush1.bf16.msra.mxu0 0
    %322 = vmatprep.subr.bf16.mxu0 0
    %323 = vmatpush1.bf16.msra.mxu0 0
    %324 = vmatprep.subr.bf16.mxu0 0
    %325 = vmatpush1.bf16.msra.mxu0 0
    %326 = vmatprep.subr.bf16.mxu0 0
    %327 = vmatpush1.bf16.msra.mxu0 0
    %328 = vmatprep.subr.bf16.mxu0 0
    %329 = vmatpush1.bf16.msra.mxu0 0
    %330 = vmatprep.subr.bf16.mxu0 0
    %331 = vmatpush1.bf16.msra.mxu0 0
    %332 = vmatprep.subr.bf16.mxu0 0
    %333 = vmatpush1.bf16.msra.mxu0 0
    %334 = vmatprep.subr.bf16.mxu0 0
    %335 = vmatpush1.bf16.msra.mxu0 0
    %336 = vmatprep.subr.bf16.mxu0 0
    %337 = vmatpush1.bf16.msra.mxu0 0
    %338 = vmatprep.mubr.bf16.mxu0 0
    %339 = vmatmul.mubr.bf16.gmra.mrb[0].mxu0 %v304
    %v340 = vpop.f32.mrb[0].mxu0
    %v341 = vadd.f32 %v293, %v340
    %v342 = vpop.f32.mrb[0].mxu0
    %v343 = vpop.f32.mrb[0].mxu0
    %v344 = vadd.f32 %v294, %v343
    %v345 = vpop.f32.mrb[0].mxu0
    %346 = vdwg.mxu0
    %v347 = vmax.f32 %v341, 0.0
    %v348 = vmax.f32 %v344, 0.0
    %v349 = vpack.c.bf16 %v348, %v347
    %350 = vmatprep.subr.bf16.mxu0 0
    %351 = vmatpush1.bf16.msra.mxu0 %v349
    %352 = vmatprep.subr.bf16.mxu0 0
    %353 = vmatpush1.bf16.msra.mxu0 0
    %354 = vmatprep.subr.bf16.mxu0 0
    %355 = vmatpush1.bf16.msra.mxu0 0
    %356 = vmatprep.subr.bf16.mxu0 0
    %357 = vmatpush1.bf16.msra.mxu0 0
    %358 = vmatprep.subr.bf16.mxu0 0
    %359 = vmatpush1.bf16.msra.mxu0 0
    %360 = vmatprep.subr.bf16.mxu0 0
    %361 = vmatpush1.bf16.msra.mxu0 0
    %362 = vmatprep.subr.bf16.mxu0 0
    %363 = vmatpush1.bf16.msra.mxu0 0
    %364 = vmatprep.subr.bf16.mxu0 0
    %365 = vmatpush1.bf16.msra.mxu0 0
    %366 = vmatprep.subr.bf16.mxu0 0
    %367 = vmatpush1.bf16.msra.mxu0 0
    %368 = vmatprep.subr.bf16.mxu0 0
    %369 = vmatpush1.bf16.msra.mxu0 0
    %370 = vmatprep.subr.bf16.mxu0 0
    %371 = vmatpush1.bf16.msra.mxu0 0
    %372 = vmatprep.subr.bf16.mxu0 0
    %373 = vmatpush1.bf16.msra.mxu0 0
    %374 = vmatprep.subr.bf16.mxu0 0
    %375 = vmatpush1.bf16.msra.mxu0 0
    %376 = vmatprep.subr.bf16.mxu0 0
    %377 = vmatpush1.bf16.msra.mxu0 0
    %378 = vmatprep.subr.bf16.mxu0 0
    %379 = vmatpush1.bf16.msra.mxu0 0
    %380 = vmatprep.subr.bf16.mxu0 0
    %381 = vmatpush1.bf16.msra.mxu0 0
    %382 = vmatprep.mubr.bf16.mxu0 0
    %383 = vmatmul.mubr.bf16.gmra.mrb[0].mxu0 %v304
    %v384 = vpop.f32.mrb[0].mxu0
    %v385 = vadd.f32 %v293, %v384
    %v386 = vpop.f32.mrb[0].mxu0
    %v387 = vpop.f32.mrb[0].mxu0
    %v388 = vadd.f32 %v294, %v387
    %v389 = vpop.f32.mrb[0].mxu0
    %390 = vdwg.mxu0
    %v391 = vmax.f32 %v385, 0.0
    %v392 = vmax.f32 %v388, 0.0
    %v393 = vpack.c.bf16 %v392, %v391
    %394 = vmatprep.subr.bf16.mxu0 0
    %395 = vmatpush1.bf16.msra.mxu0 %v393
    %396 = vmatprep.subr.bf16.mxu0 0
    %397 = vmatpush1.bf16.msra.mxu0 0
    %398 = vmatprep.subr.bf16.mxu0 0
    %399 = vmatpush1.bf16.msra.mxu0 0
    %400 = vmatprep.subr.bf16.mxu0 0
    %401 = vmatpush1.bf16.msra.mxu0 0
    %402 = vmatprep.subr.bf16.mxu0 0
    %403 = vmatpush1.bf16.msra.mxu0 0
    %404 = vmatprep.subr.bf16.mxu0 0
    %405 = vmatpush1.bf16.msra.mxu0 0
    %406 = vmatprep.subr.bf16.mxu0 0
    %407 = vmatpush1.bf16.msra.mxu0 0
    %408 = vmatprep.subr.bf16.mxu0 0
    %409 = vmatpush1.bf16.msra.mxu0 0
    %410 = vmatprep.subr.bf16.mxu0 0
    %411 = vmatpush1.bf16.msra.mxu0 0
    %412 = vmatprep.subr.bf16.mxu0 0
    %413 = vmatpush1.bf16.msra.mxu0 0
    %414 = vmatprep.subr.bf16.mxu0 0
    %415 = vmatpush1.bf16.msra.mxu0 0
    %416 = vmatprep.subr.bf16.mxu0 0
    %417 = vmatpush1.bf16.msra.mxu0 0
    %418 = vmatprep.subr.bf16.mxu0 0
    %419 = vmatpush1.bf16.msra.mxu0 0
    %420 = vmatprep.subr.bf16.mxu0 0
    %421 = vmatpush1.bf16.msra.mxu0 0
    %422 = vmatprep.subr.bf16.mxu0 0
    %423 = vmatpush1.bf16.msra.mxu0 0
    %424 = vmatprep.subr.bf16.mxu0 0
    %425 = vmatpush1.bf16.msra.mxu0 0
    %426 = vmatprep.mubr.bf16.mxu0 0
    %427 = vmatmul.mubr.bf16.gmra.mrb[0].mxu0 %v304
    %v428 = vpop.f32.mrb[0].mxu0
    %v429 = vadd.f32 %v293, %v428
    %v430 = vpop.f32.mrb[0].mxu0
    %v431 = vpop.f32.mrb[0].mxu0
    %v432 = vadd.f32 %v294, %v431
    %v433 = vpop.f32.mrb[0].mxu0
    %434 = vdwg.mxu0
    %v435 = vmax.f32 %v429, 0.0
    %v436 = vmax.f32 %v432, 0.0
    %v437 = vpack.c.bf16 %v436, %v435
    %438 = vmatprep.subr.bf16.mxu0 0
    %439 = vmatpush1.bf16.msra.mxu0 %v437
    %440 = vmatprep.subr.bf16.mxu0 0
    %441 = vmatpush1.bf16.msra.mxu0 0
    %442 = vmatprep.subr.bf16.mxu0 0
    %443 = vmatpush1.bf16.msra.mxu0 0
    %444 = vmatprep.subr.bf16.mxu0 0
    %445 = vmatpush1.bf16.msra.mxu0 0
    %446 = vmatprep.subr.bf16.mxu0 0
    %447 = vmatpush1.bf16.msra.mxu0 0
    %448 = vmatprep.subr.bf16.mxu0 0
    %449 = vmatpush1.bf16.msra.mxu0 0
    %450 = vmatprep.subr.bf16.mxu0 0
    %451 = vmatpush1.bf16.msra.mxu0 0
    %452 = vmatprep.subr.bf16.mxu0 0
    %453 = vmatpush1.bf16.msra.mxu0 0
    %454 = vmatprep.subr.bf16.mxu0 0
    %455 = vmatpush1.bf16.msra.mxu0 0
    %456 = vmatprep.subr.bf16.mxu0 0
    %457 = vmatpush1.bf16.msra.mxu0 0
    %458 = vmatprep.subr.bf16.mxu0 0
    %459 = vmatpush1.bf16.msra.mxu0 0
    %460 = vmatprep.subr.bf16.mxu0 0
    %461 = vmatpush1.bf16.msra.mxu0 0
    %462 = vmatprep.subr.bf16.mxu0 0
    %463 = vmatpush1.bf16.msra.mxu0 0
    %464 = vmatprep.subr.bf16.mxu0 0
    %465 = vmatpush1.bf16.msra.mxu0 0
    %466 = vmatprep.subr.bf16.mxu0 0
    %467 = vmatpush1.bf16.msra.mxu0 0
    %468 = vmatprep.subr.bf16.mxu0 0
    %469 = vmatpush1.bf16.msra.mxu0 0
    %470 = vmatprep.mubr.bf16.mxu0 0
    %471 = vmatmul.mubr.bf16.gmra.mrb[0].mxu0 %v304
    %v472 = vpop.f32.mrb[0].mxu0
    %v473 = vadd.f32 %v293, %v472
    %v474 = vpop.f32.mrb[0].mxu0
    %v475 = vpop.f32.mrb[0].mxu0
    %v476 = vadd.f32 %v294, %v475
    %v477 = vpop.f32.mrb[0].mxu0
    %478 = vdwg.mxu0
    %v479 = vmax.f32 %v473, 0.0
    %v480 = vmax.f32 %v476, 0.0
    %v481 = vpack.c.bf16 %v480, %v479
    %482 = vmatprep.subr.bf16.mxu0 0
    %483 = vmatpush1.bf16.msra.mxu0 %v481
    %484 = vmatprep.subr.bf16.mxu0 0
    %485 = vmatpush1.bf16.msra.mxu0 0
    %486 = vmatprep.subr.bf16.mxu0 0
    %487 = vmatpush1.bf16.msra.mxu0 0
    %488 = vmatprep.subr.bf16.mxu0 0
    %489 = vmatpush1.bf16.msra.mxu0 0
    %490 = vmatprep.subr.bf16.mxu0 0
    %491 = vmatpush1.bf16.msra.mxu0 0
    %492 = vmatprep.subr.bf16.mxu0 0
    %493 = vmatpush1.bf16.msra.mxu0 0
    %494 = vmatprep.subr.bf16.mxu0 0
    %495 = vmatpush1.bf16.msra.mxu0 0
    %496 = vmatprep.subr.bf16.mxu0 0
    %497 = vmatpush1.bf16.msra.mxu0 0
    %498 = vmatprep.subr.bf16.mxu0 0
    %499 = vmatpush1.bf16.msra.mxu0 0
    %500 = vmatprep.subr.bf16.mxu0 0
    %501 = vmatpush1.bf16.msra.mxu0 0
    %502 = vmatprep.subr.bf16.mxu0 0
    %503 = vmatpush1.bf16.msra.mxu0 0
    %504 = vmatprep.subr.bf16.mxu0 0
    %505 = vmatpush1.bf16.msra.mxu0 0
    %506 = vmatprep.subr.bf16.mxu0 0
    %507 = vmatpush1.bf16.msra.mxu0 0
    %508 = vmatprep.subr.bf16.mxu0 0
    %509 = vmatpush1.bf16.msra.mxu0 0
    %510 = vmatprep.subr.bf16.mxu0 0
    %511 = vmatpush1.bf16.msra.mxu0 0
    %512 = vmatprep.subr.bf16.mxu0 0
    %513 = vmatpush1.bf16.msra.mxu0 0
    %514 = vmatprep.mubr.bf16.mxu0 0
    %515 = vmatmul.mubr.bf16.gmra.mrb[0].mxu0 %v304
    %v516 = vpop.f32.mrb[0].mxu0
    %v517 = vadd.f32 %v293, %v516
    %v518 = vpop.f32.mrb[0].mxu0
    %v519 = vpop.f32.mrb[0].mxu0
    %v520 = vadd.f32 %v294, %v519
    %v521 = vpop.f32.mrb[0].mxu0
    %522 = vdwg.mxu0
    %v523 = vmax.f32 %v517, 0.0
    %v524 = vmax.f32 %v520, 0.0
    %v525 = vpack.c.bf16 %v524, %v523
    %526 = vmatprep.subr.bf16.mxu0 0
    %527 = vmatpush1.bf16.msra.mxu0 %v525
    %528 = vmatprep.subr.bf16.mxu0 0
    %529 = vmatpush1.bf16.msra.mxu0 0
    %530 = vmatprep.subr.bf16.mxu0 0
    %531 = vmatpush1.bf16.msra.mxu0 0
    %532 = vmatprep.subr.bf16.mxu0 0
    %533 = vmatpush1.bf16.msra.mxu0 0
    %534 = vmatprep.subr.bf16.mxu0 0
    %535 = vmatpush1.bf16.msra.mxu0 0
    %536 = vmatprep.subr.bf16.mxu0 0
    %537 = vmatpush1.bf16.msra.mxu0 0
    %538 = vmatprep.subr.bf16.mxu0 0
    %539 = vmatpush1.bf16.msra.mxu0 0
    %540 = vmatprep.subr.bf16.mxu0 0
    %541 = vmatpush1.bf16.msra.mxu0 0
    %542 = vmatprep.subr.bf16.mxu0 0
    %543 = vmatpush1.bf16.msra.mxu0 0
    %544 = vmatprep.subr.bf16.mxu0 0
    %545 = vmatpush1.bf16.msra.mxu0 0
    %546 = vmatprep.subr.bf16.mxu0 0
    %547 = vmatpush1.bf16.msra.mxu0 0
    %548 = vmatprep.subr.bf16.mxu0 0
    %549 = vmatpush1.bf16.msra.mxu0 0
    %550 = vmatprep.subr.bf16.mxu0 0
    %551 = vmatpush1.bf16.msra.mxu0 0
    %552 = vmatprep.subr.bf16.mxu0 0
    %553 = vmatpush1.bf16.msra.mxu0 0
    %554 = vmatprep.subr.bf16.mxu0 0
    %555 = vmatpush1.bf16.msra.mxu0 0
    %556 = vmatprep.subr.bf16.mxu0 0
    %557 = vmatpush1.bf16.msra.mxu0 0
    %558 = vmatprep.mubr.bf16.mxu0 0
    %559 = vmatmul.mubr.bf16.gmra.mrb[0].mxu0 %v304
    %v560 = vpop.f32.mrb[0].mxu0
    %v561 = vadd.f32 %v293, %v560
    %v562 = vpop.f32.mrb[0].mxu0
    %v563 = vpop.f32.mrb[0].mxu0
    %v564 = vadd.f32 %v294, %v563
    %v565 = vpop.f32.mrb[0].mxu0
    %566 = vdwg.mxu0
    %v567 = vmax.f32 %v561, 0.0
    %v568 = vmax.f32 %v564, 0.0
    %v569 = vpack.c.bf16 %v568, %v567
    %570 = vmatprep.subr.bf16.mxu0 0
    %571 = vmatpush1.bf16.msra.mxu0 %v569
    %572 = vmatprep.subr.bf16.mxu0 0
    %573 = vmatpush1.bf16.msra.mxu0 0
    %574 = vmatprep.subr.bf16.mxu0 0
    %575 = vmatpush1.bf16.msra.mxu0 0
    %576 = vmatprep.subr.bf16.mxu0 0
    %577 = vmatpush1.bf16.msra.mxu0 0
    %578 = vmatprep.subr.bf16.mxu0 0
    %579 = vmatpush1.bf16.msra.mxu0 0
    %580 = vmatprep.subr.bf16.mxu0 0
    %581 = vmatpush1.bf16.msra.mxu0 0
    %582 = vmatprep.subr.bf16.mxu0 0
    %583 = vmatpush1.bf16.msra.mxu0 0
    %584 = vmatprep.subr.bf16.mxu0 0
    %585 = vmatpush1.bf16.msra.mxu0 0
    %586 = vmatprep.subr.bf16.mxu0 0
    %587 = vmatpush1.bf16.msra.mxu0 0
    %588 = vmatprep.subr.bf16.mxu0 0
    %589 = vmatpush1.bf16.msra.mxu0 0
    %590 = vmatprep.subr.bf16.mxu0 0
    %591 = vmatpush1.bf16.msra.mxu0 0
    %592 = vmatprep.subr.bf16.mxu0 0
    %593 = vmatpush1.bf16.msra.mxu0 0
    %594 = vmatprep.subr.bf16.mxu0 0
    %595 = vmatpush1.bf16.msra.mxu0 0
    %596 = vmatprep.subr.bf16.mxu0 0
    %597 = vmatpush1.bf16.msra.mxu0 0
    %598 = vmatprep.subr.bf16.mxu0 0
    %599 = vmatpush1.bf16.msra.mxu0 0
    %600 = vmatprep.subr.bf16.mxu0 0
    %601 = vmatpush1.bf16.msra.mxu0 0
    %602 = vmatprep.mubr.bf16.mxu0 0
    %603 = vmatmul.mubr.bf16.gmra.mrb[0].mxu0 %v304
    %v604 = vpop.f32.mrb[0].mxu0
    %v605 = vadd.f32 %v293, %v604
    %v606 = vpop.f32.mrb[0].mxu0
    %v607 = vpop.f32.mrb[0].mxu0
    %v608 = vadd.f32 %v294, %v607
    %v609 = vpop.f32.mrb[0].mxu0
    %610 = vdwg.mxu0
    %v611 = vmax.f32 %v605, 0.0
    %v612 = vmax.f32 %v608, 0.0
    %v613 = vpack.c.bf16 %v612, %v611
    %614 = vmatprep.subr.bf16.mxu0 0
    %615 = vmatpush1.bf16.msra.mxu0 %v613
    %616 = vmatprep.subr.bf16.mxu0 0
    %617 = vmatpush1.bf16.msra.mxu0 0
    %618 = vmatprep.subr.bf16.mxu0 0
    %619 = vmatpush1.bf16.msra.mxu0 0
    %620 = vmatprep.subr.bf16.mxu0 0
    %621 = vmatpush1.bf16.msra.mxu0 0
    %622 = vmatprep.subr.bf16.mxu0 0
    %623 = vmatpush1.bf16.msra.mxu0 0
    %624 = vmatprep.subr.bf16.mxu0 0
    %625 = vmatpush1.bf16.msra.mxu0 0
    %626 = vmatprep.subr.bf16.mxu0 0
    %627 = vmatpush1.bf16.msra.mxu0 0
    %628 = vmatprep.subr.bf16.mxu0 0
    %629 = vmatpush1.bf16.msra.mxu0 0
    %630 = vmatprep.subr.bf16.mxu0 0
    %631 = vmatpush1.bf16.msra.mxu0 0
    %632 = vmatprep.subr.bf16.mxu0 0
    %633 = vmatpush1.bf16.msra.mxu0 0
    %634 = vmatprep.subr.bf16.mxu0 0
    %635 = vmatpush1.bf16.msra.mxu0 0
    %636 = vmatprep.subr.bf16.mxu0 0
    %637 = vmatpush1.bf16.msra.mxu0 0
    %638 = vmatprep.subr.bf16.mxu0 0
    %639 = vmatpush1.bf16.msra.mxu0 0
    %640 = vmatprep.subr.bf16.mxu0 0
    %641 = vmatpush1.bf16.msra.mxu0 0
    %642 = vmatprep.subr.bf16.mxu0 0
    %643 = vmatpush1.bf16.msra.mxu0 0
    %644 = vmatprep.subr.bf16.mxu0 0
    %645 = vmatpush1.bf16.msra.mxu0 0
    %646 = vmatprep.mubr.bf16.mxu0 0
    %647 = vmatmul.mubr.bf16.gmra.mrb[0].mxu0 %v304
    %v648 = vpop.f32.mrb[0].mxu0
    %v649 = vadd.f32 %v293, %v648
    %v650 = vpop.f32.mrb[0].mxu0
    %v651 = vpop.f32.mrb[0].mxu0
    %v652 = vadd.f32 %v294, %v651
    %v653 = vpop.f32.mrb[0].mxu0
    %654 = vdwg.mxu0
    %v655 = vmax.f32 %v649, 0.0
    %v656 = vmax.f32 %v652, 0.0
    %v657 = vpack.c.bf16 %v656, %v655
    %658 = vmatprep.subr.bf16.mxu0 0
    %659 = vmatpush1.bf16.msra.mxu0 %v657
    %660 = vmatprep.subr.bf16.mxu0 0
    %661 = vmatpush1.bf16.msra.mxu0 0
    %662 = vmatprep.subr.bf16.mxu0 0
    %663 = vmatpush1.bf16.msra.mxu0 0
    %664 = vmatprep.subr.bf16.mxu0 0
    %665 = vmatpush1.bf16.msra.mxu0 0
    %666 = vmatprep.subr.bf16.mxu0 0
    %667 = vmatpush1.bf16.msra.mxu0 0
    %668 = vmatprep.subr.bf16.mxu0 0
    %669 = vmatpush1.bf16.msra.mxu0 0
    %670 = vmatprep.subr.bf16.mxu0 0
    %671 = vmatpush1.bf16.msra.mxu0 0
    %672 = vmatprep.subr.bf16.mxu0 0
    %673 = vmatpush1.bf16.msra.mxu0 0
    %674 = vmatprep.subr.bf16.mxu0 0
    %675 = vmatpush1.bf16.msra.mxu0 0
    %676 = vmatprep.subr.bf16.mxu0 0
    %677 = vmatpush1.bf16.msra.mxu0 0
    %678 = vmatprep.subr.bf16.mxu0 0
    %679 = vmatpush1.bf16.msra.mxu0 0
    %680 = vmatprep.subr.bf16.mxu0 0
    %681 = vmatpush1.bf16.msra.mxu0 0
    %682 = vmatprep.subr.bf16.mxu0 0
    %683 = vmatpush1.bf16.msra.mxu0 0
    %684 = vmatprep.subr.bf16.mxu0 0
    %685 = vmatpush1.bf16.msra.mxu0 0
    %686 = vmatprep.subr.bf16.mxu0 0
    %687 = vmatpush1.bf16.msra.mxu0 0
    %688 = vmatprep.subr.bf16.mxu0 0
    %689 = vmatpush1.bf16.msra.mxu0 0
    %690 = vmatprep.mubr.bf16.mxu0 0
    %691 = vmatmul.mubr.bf16.gmra.mrb[0].mxu0 %v304
    %v692 = vpop.f32.mrb[0].mxu0
    %v693 = vadd.f32 %v293, %v692
    %v694 = vpop.f32.mrb[0].mxu0
    %v695 = vpop.f32.mrb[0].mxu0
    %v696 = vadd.f32 %v294, %v695
    %v697 = vpop.f32.mrb[0].mxu0
    %698 = vdwg.mxu0
    %v699 = vmax.f32 %v693, 0.0
    %v700 = vmax.f32 %v696, 0.0
    %v701 = vpack.c.bf16 %v700, %v699
    %702 = vmatprep.subr.bf16.mxu0 0
    %703 = vmatpush1.bf16.msra.mxu0 %v701
    %704 = vmatprep.subr.bf16.mxu0 0
    %705 = vmatpush1.bf16.msra.mxu0 0
    %706 = vmatprep.subr.bf16.mxu0 0
    %707 = vmatpush1.bf16.msra.mxu0 0
    %708 = vmatprep.subr.bf16.mxu0 0
    %709 = vmatpush1.bf16.msra.mxu0 0
    %710 = vmatprep.subr.bf16.mxu0 0
    %711 = vmatpush1.bf16.msra.mxu0 0
    %712 = vmatprep.subr.bf16.mxu0 0
    %713 = vmatpush1.bf16.msra.mxu0 0
    %714 = vmatprep.subr.bf16.mxu0 0
    %715 = vmatpush1.bf16.msra.mxu0 0
    %716 = vmatprep.subr.bf16.mxu0 0
    %717 = vmatpush1.bf16.msra.mxu0 0
    %718 = vmatprep.subr.bf16.mxu0 0
    %719 = vmatpush1.bf16.msra.mxu0 0
    %720 = vmatprep.subr.bf16.mxu0 0
    %721 = vmatpush1.bf16.msra.mxu0 0
    %722 = vmatprep.subr.bf16.mxu0 0
    %723 = vmatpush1.bf16.msra.mxu0 0
    %724 = vmatprep.subr.bf16.mxu0 0
    %725 = vmatpush1.bf16.msra.mxu0 0
    %726 = vmatprep.subr.bf16.mxu0 0
    %727 = vmatpush1.bf16.msra.mxu0 0
    %728 = vmatprep.subr.bf16.mxu0 0
    %729 = vmatpush1.bf16.msra.mxu0 0
    %730 = vmatprep.subr.bf16.mxu0 0
    %731 = vmatpush1.bf16.msra.mxu0 0
    %732 = vmatprep.subr.bf16.mxu0 0
    %733 = vmatpush1.bf16.msra.mxu0 0
    %734 = vmatprep.mubr.bf16.mxu0 0
    %735 = vmatmul.mubr.bf16.gmra.mrb[0].mxu0 %v304
    %v736 = vpop.f32.mrb[0].mxu0
    %v737 = vadd.f32 %v293, %v736
    %v738 = vpop.f32.mrb[0].mxu0
    %v739 = vpop.f32.mrb[0].mxu0
    %v740 = vadd.f32 %v294, %v739
    %v741 = vpop.f32.mrb[0].mxu0
    %742 = vdwg.mxu0
    %v743 = vmax.f32 %v737, 0.0
    %v744 = vmax.f32 %v740, 0.0
    %v745 = vpack.c.bf16 %v744, %v743
    %746 = vmatprep.subr.bf16.mxu0 0
    %747 = vmatpush1.bf16.msra.mxu0 %v745
    %748 = vmatprep.subr.bf16.mxu0 0
    %749 = vmatpush1.bf16.msra.mxu0 0
    %750 = vmatprep.subr.bf16.mxu0 0
    %751 = vmatpush1.bf16.msra.mxu0 0
    %752 = vmatprep.subr.bf16.mxu0 0
    %753 = vmatpush1.bf16.msra.mxu0 0
    %754 = vmatprep.subr.bf16.mxu0 0
    %755 = vmatpush1.bf16.msra.mxu0 0
    %756 = vmatprep.subr.bf16.mxu0 0
    %757 = vmatpush1.bf16.msra.mxu0 0
    %758 = vmatprep.subr.bf16.mxu0 0
    %759 = vmatpush1.bf16.msra.mxu0 0
    %760 = vmatprep.subr.bf16.mxu0 0
    %761 = vmatpush1.bf16.msra.mxu0 0
    %762 = vmatprep.subr.bf16.mxu0 0
    %763 = vmatpush1.bf16.msra.mxu0 0
    %764 = vmatprep.subr.bf16.mxu0 0
    %765 = vmatpush1.bf16.msra.mxu0 0
    %766 = vmatprep.subr.bf16.mxu0 0
    %767 = vmatpush1.bf16.msra.mxu0 0
    %768 = vmatprep.subr.bf16.mxu0 0
    %769 = vmatpush1.bf16.msra.mxu0 0
    %770 = vmatprep.subr.bf16.mxu0 0
    %771 = vmatpush1.bf16.msra.mxu0 0
    %772 = vmatprep.subr.bf16.mxu0 0
    %773 = vmatpush1.bf16.msra.mxu0 0
    %774 = vmatprep.subr.bf16.mxu0 0
    %775 = vmatpush1.bf16.msra.mxu0 0
    %776 = vmatprep.subr.bf16.mxu0 0
    %777 = vmatpush1.bf16.msra.mxu0 0
    %778 = vmatprep.mubr.bf16.mxu0 0
    %779 = vmatmul.mubr.bf16.gmra.mrb[0].mxu0 %v304
    %v780 = vpop.f32.mrb[0].mxu0
    %v781 = vadd.f32 %v293, %v780
    %v782 = vpop.f32.mrb[0].mxu0
    %v783 = vpop.f32.mrb[0].mxu0
    %v784 = vadd.f32 %v294, %v783
    %v785 = vpop.f32.mrb[0].mxu0
    %786 = vdwg.mxu0
    %v787 = vmax.f32 %v781, 0.0
    %v788 = vmax.f32 %v784, 0.0
    %v789 = vpack.c.bf16 %v788, %v787
    %790 = vmatprep.subr.bf16.mxu0 0
    %791 = vmatpush1.bf16.msra.mxu0 %v789
    %792 = vmatprep.subr.bf16.mxu0 0
    %793 = vmatpush1.bf16.msra.mxu0 0
    %794 = vmatprep.subr.bf16.mxu0 0
    %795 = vmatpush1.bf16.msra.mxu0 0
    %796 = vmatprep.subr.bf16.mxu0 0
    %797 = vmatpush1.bf16.msra.mxu0 0
    %798 = vmatprep.subr.bf16.mxu0 0
    %799 = vmatpush1.bf16.msra.mxu0 0
    %800 = vmatprep.subr.bf16.mxu0 0
    %801 = vmatpush1.bf16.msra.mxu0 0
    %802 = vmatprep.subr.bf16.mxu0 0
    %803 = vmatpush1.bf16.msra.mxu0 0
    %804 = vmatprep.subr.bf16.mxu0 0
    %805 = vmatpush1.bf16.msra.mxu0 0
    %806 = vmatprep.subr.bf16.mxu0 0
    %807 = vmatpush1.bf16.msra.mxu0 0
    %808 = vmatprep.subr.bf16.mxu0 0
    %809 = vmatpush1.bf16.msra.mxu0 0
    %810 = vmatprep.subr.bf16.mxu0 0
    %811 = vmatpush1.bf16.msra.mxu0 0
    %812 = vmatprep.subr.bf16.mxu0 0
    %813 = vmatpush1.bf16.msra.mxu0 0
    %814 = vmatprep.subr.bf16.mxu0 0
    %815 = vmatpush1.bf16.msra.mxu0 0
    %816 = vmatprep.subr.bf16.mxu0 0
    %817 = vmatpush1.bf16.msra.mxu0 0
    %818 = vmatprep.subr.bf16.mxu0 0
    %819 = vmatpush1.bf16.msra.mxu0 0
    %820 = vmatprep.subr.bf16.mxu0 0
    %821 = vmatpush1.bf16.msra.mxu0 0
    %822 = vmatprep.mubr.bf16.mxu0 0
    %823 = vmatmul.mubr.bf16.gmra.mrb[0].mxu0 %v304
    %v824 = vpop.f32.mrb[0].mxu0
    %v825 = vadd.f32 %v293, %v824
    %v826 = vpop.f32.mrb[0].mxu0
    %v827 = vpop.f32.mrb[0].mxu0
    %v828 = vadd.f32 %v294, %v827
    %v829 = vpop.f32.mrb[0].mxu0
    %830 = vdwg.mxu0
    %v831 = vmax.f32 %v825, 0.0
    %v832 = vmax.f32 %v828, 0.0
    %v833 = vpack.c.bf16 %v832, %v831
    %834 = vmatprep.subr.bf16.mxu0 0
    %835 = vmatpush1.bf16.msra.mxu0 %v833
    %836 = vmatprep.subr.bf16.mxu0 0
    %837 = vmatpush1.bf16.msra.mxu0 0
    %838 = vmatprep.subr.bf16.mxu0 0
    %839 = vmatpush1.bf16.msra.mxu0 0
    %840 = vmatprep.subr.bf16.mxu0 0
    %841 = vmatpush1.bf16.msra.mxu0 0
    %842 = vmatprep.subr.bf16.mxu0 0
    %843 = vmatpush1.bf16.msra.mxu0 0
    %844 = vmatprep.subr.bf16.mxu0 0
    %845 = vmatpush1.bf16.msra.mxu0 0
    %846 = vmatprep.subr.bf16.mxu0 0
    %847 = vmatpush1.bf16.msra.mxu0 0
    %848 = vmatprep.subr.bf16.mxu0 0
    %849 = vmatpush1.bf16.msra.mxu0 0
    %850 = vmatprep.subr.bf16.mxu0 0
    %851 = vmatpush1.bf16.msra.mxu0 0
    %852 = vmatprep.subr.bf16.mxu0 0
    %853 = vmatpush1.bf16.msra.mxu0 0
    %854 = vmatprep.subr.bf16.mxu0 0
    %855 = vmatpush1.bf16.msra.mxu0 0
    %856 = vmatprep.subr.bf16.mxu0 0
    %857 = vmatpush1.bf16.msra.mxu0 0
    %858 = vmatprep.subr.bf16.mxu0 0
    %859 = vmatpush1.bf16.msra.mxu0 0
    %860 = vmatprep.subr.bf16.mxu0 0
    %861 = vmatpush1.bf16.msra.mxu0 0
    %862 = vmatprep.subr.bf16.mxu0 0
    %863 = vmatpush1.bf16.msra.mxu0 0
    %864 = vmatprep.subr.bf16.mxu0 0
    %865 = vmatpush1.bf16.msra.mxu0 0
    %866 = vmatprep.mubr.bf16.mxu0 0
    %867 = vmatmul.mubr.bf16.gmra.mrb[0].mxu0 %v304
    %v868 = vpop.f32.mrb[0].mxu0
    %v869 = vadd.f32 %v293, %v868
    %v870 = vpop.f32.mrb[0].mxu0
    %v871 = vpop.f32.mrb[0].mxu0
    %v872 = vadd.f32 %v294, %v871
    %v873 = vpop.f32.mrb[0].mxu0
    %874 = vdwg.mxu0
    %v875 = vmax.f32 %v869, 0.0
    %v876 = vmax.f32 %v872, 0.0
    %v877 = vpack.c.bf16 %v876, %v875
    %878 = vmatprep.subr.bf16.mxu0 0
    %879 = vmatpush1.bf16.msra.mxu0 %v877
    %880 = vmatprep.subr.bf16.mxu0 0
    %881 = vmatpush1.bf16.msra.mxu0 0
    %882 = vmatprep.subr.bf16.mxu0 0
    %883 = vmatpush1.bf16.msra.mxu0 0
    %884 = vmatprep.subr.bf16.mxu0 0
    %885 = vmatpush1.bf16.msra.mxu0 0
    %886 = vmatprep.subr.bf16.mxu0 0
    %887 = vmatpush1.bf16.msra.mxu0 0
    %888 = vmatprep.subr.bf16.mxu0 0
    %889 = vmatpush1.bf16.msra.mxu0 0
    %890 = vmatprep.subr.bf16.mxu0 0
    %891 = vmatpush1.bf16.msra.mxu0 0
    %892 = vmatprep.subr.bf16.mxu0 0
    %893 = vmatpush1.bf16.msra.mxu0 0
    %894 = vmatprep.subr.bf16.mxu0 0
    %895 = vmatpush1.bf16.msra.mxu0 0
    %896 = vmatprep.subr.bf16.mxu0 0
    %897 = vmatpush1.bf16.msra.mxu0 0
    %898 = vmatprep.subr.bf16.mxu0 0
    %899 = vmatpush1.bf16.msra.mxu0 0
    %900 = vmatprep.subr.bf16.mxu0 0
    %901 = vmatpush1.bf16.msra.mxu0 0
    %902 = vmatprep.subr.bf16.mxu0 0
    %903 = vmatpush1.bf16.msra.mxu0 0
    %904 = vmatprep.subr.bf16.mxu0 0
    %905 = vmatpush1.bf16.msra.mxu0 0
    %906 = vmatprep.subr.bf16.mxu0 0
    %907 = vmatpush1.bf16.msra.mxu0 0
    %908 = vmatprep.subr.bf16.mxu0 0
    %909 = vmatpush1.bf16.msra.mxu0 0
    %910 = vmatprep.mubr.bf16.mxu0 0
    %911 = vmatmul.mubr.bf16.gmra.mrb[0].mxu0 %v304
    %v912 = vpop.f32.mrb[0].mxu0
    %v913 = vadd.f32 %v293, %v912
    %v914 = vpop.f32.mrb[0].mxu0
    %v915 = vpop.f32.mrb[0].mxu0
    %v916 = vadd.f32 %v294, %v915
    %v917 = vpop.f32.mrb[0].mxu0
    %918 = vdwg.mxu0
    %v919 = vmax.f32 %v913, 0.0
    %v920 = vmax.f32 %v916, 0.0
    %v921 = vpack.c.bf16 %v920, %v919
    %922 = vmatprep.subr.bf16.mxu0 0
    %923 = vmatpush1.bf16.msra.mxu0 %v921
    %924 = vmatprep.subr.bf16.mxu0 0
    %925 = vmatpush1.bf16.msra.mxu0 0
    %926 = vmatprep.subr.bf16.mxu0 0
    %927 = vmatpush1.bf16.msra.mxu0 0
    %928 = vmatprep.subr.bf16.mxu0 0
    %929 = vmatpush1.bf16.msra.mxu0 0
    %930 = vmatprep.subr.bf16.mxu0 0
    %931 = vmatpush1.bf16.msra.mxu0 0
    %932 = vmatprep.subr.bf16.mxu0 0
    %933 = vmatpush1.bf16.msra.mxu0 0
    %934 = vmatprep.subr.bf16.mxu0 0
    %935 = vmatpush1.bf16.msra.mxu0 0
    %936 = vmatprep.subr.bf16.mxu0 0
    %937 = vmatpush1.bf16.msra.mxu0 0
    %938 = vmatprep.subr.bf16.mxu0 0
    %939 = vmatpush1.bf16.msra.mxu0 0
    %940 = vmatprep.subr.bf16.mxu0 0
    %941 = vmatpush1.bf16.msra.mxu0 0
    %942 = vmatprep.subr.bf16.mxu0 0
    %943 = vmatpush1.bf16.msra.mxu0 0
    %944 = vmatprep.subr.bf16.mxu0 0
    %945 = vmatpush1.bf16.msra.mxu0 0
    %946 = vmatprep.subr.bf16.mxu0 0
    %947 = vmatpush1.bf16.msra.mxu0 0
    %948 = vmatprep.subr.bf16.mxu0 0
    %949 = vmatpush1.bf16.msra.mxu0 0
    %950 = vmatprep.subr.bf16.mxu0 0
    %951 = vmatpush1.bf16.msra.mxu0 0
    %952 = vmatprep.subr.bf16.mxu0 0
    %953 = vmatpush1.bf16.msra.mxu0 0
    %954 = vmatprep.mubr.bf16.mxu0 0
    %955 = vmatmul.mubr.bf16.gmra.mrb[0].mxu0 %v304
    %v956 = vpop.f32.mrb[0].mxu0
    %v957 = vadd.f32 %v293, %v956
    %v958 = vpop.f32.mrb[0].mxu0
    %v959 = vpop.f32.mrb[0].mxu0
    %v960 = vadd.f32 %v294, %v959
    %v961 = vpop.f32.mrb[0].mxu0
    %962 = vdwg.mxu0
    %v963 = vmax.f32 %v957, 0.0
    %v964 = vmax.f32 %v960, 0.0
    %v965 = vpack.c.bf16 %v964, %v963
    %966 = vmatprep.subr.bf16.mxu0 0
    %967 = vmatpush1.bf16.msra.mxu0 %v965
    %968 = vmatprep.subr.bf16.mxu0 0
    %969 = vmatpush1.bf16.msra.mxu0 0
    %970 = vmatprep.subr.bf16.mxu0 0
    %971 = vmatpush1.bf16.msra.mxu0 0
    %972 = vmatprep.subr.bf16.mxu0 0
    %973 = vmatpush1.bf16.msra.mxu0 0
    %974 = vmatprep.subr.bf16.mxu0 0
    %975 = vmatpush1.bf16.msra.mxu0 0
    %976 = vmatprep.subr.bf16.mxu0 0
    %977 = vmatpush1.bf16.msra.mxu0 0
    %978 = vmatprep.subr.bf16.mxu0 0
    %979 = vmatpush1.bf16.msra.mxu0 0
    %980 = vmatprep.subr.bf16.mxu0 0
    %981 = vmatpush1.bf16.msra.mxu0 0
    %982 = vmatprep.subr.bf16.mxu0 0
    %983 = vmatpush1.bf16.msra.mxu0 0
    %984 = vmatprep.subr.bf16.mxu0 0
    %985 = vmatpush1.bf16.msra.mxu0 0
    %986 = vmatprep.subr.bf16.mxu0 0
    %987 = vmatpush1.bf16.msra.mxu0 0
    %988 = vmatprep.subr.bf16.mxu0 0
    %989 = vmatpush1.bf16.msra.mxu0 0
    %990 = vmatprep.subr.bf16.mxu0 0
    %991 = vmatpush1.bf16.msra.mxu0 0
    %992 = vmatprep.subr.bf16.mxu0 0
    %993 = vmatpush1.bf16.msra.mxu0 0
    %994 = vmatprep.subr.bf16.mxu0 0
    %995 = vmatpush1.bf16.msra.mxu0 0
    %996 = vmatprep.subr.bf16.mxu0 0
    %997 = vmatpush1.bf16.msra.mxu0 0
    %998 = vmatprep.mubr.bf16.mxu0 0
    %999 = vmatmul.mubr.bf16.gmra.mrb[0].mxu0 %v304
    %v1000 = vpop.f32.mrb[0].mxu0
    %v1001 = vadd.f32 %v293, %v1000
    %v1002 = vpop.f32.mrb[0].mxu0
    %v1003 = vpop.f32.mrb[0].mxu0
    %v1004 = vadd.f32 %v294, %v1003
    %v1005 = vpop.f32.mrb[0].mxu0
    %1006 = vdwg.mxu0
    %v1007 = vmax.f32 %v1001, 0.0
    %v1008 = vmax.f32 %v1004, 0.0
    %v1009 = vld [vmem:[#allocation11] sm:$0xff]
    %v1010 = vld [vmem:[#allocation11 + $0x8] sm:$0xff]
    %v1011 = vld [vmem:[#allocation11 + $0x10] sm:$0xff]
    %v1012 = vld [vmem:[#allocation11 + $0x18] sm:$0xff]
    %v1013 = vld [vmem:[#allocation11 + $0x20] sm:$0xff]
    %v1014 = vld [vmem:[#allocation11 + $0x28] sm:$0xff]
    %v1015 = vld [vmem:[#allocation11 + $0x30] sm:$0xff]
    %v1016 = vld [vmem:[#allocation11 + $0x38] sm:$0xff]
    %v1017 = vld [vmem:[#allocation11 + $0x40] sm:$0xff]
    %v1018 = vld [vmem:[#allocation11 + $0x48] sm:$0xff]
    %v1019 = vld [vmem:[#allocation11 + $0x50] sm:$0xff]
    %v1020 = vld [vmem:[#allocation11 + $0x58] sm:$0xff]
    %v1021 = vld [vmem:[#allocation11 + $0x60] sm:$0xff]
    %v1022 = vld [vmem:[#allocation11 + $0x68] sm:$0xff]
    %v1023 = vld [vmem:[#allocation11 + $0x70] sm:$0xff]
    %v1024 = vld [vmem:[#allocation11 + $0x78] sm:$0xff]
    %v1025 = vld [vmem:[%s7] sm:$0x1]
    %v1027 = vlaneseq
    %v1028 = vshrl.u32 %v1027, 7
    %v1029 = vsub.s32 0, %v1028
    %v1030 = vrot.slane %v1025, %v1029
    %1032 = vmatprep.subr.mxu0 0.0
    %1033 = vmatpush1.msra.mxu0 %v1009
    %1034 = vmatprep.subr.mxu0 0.0
    %1035 = vmatpush1.msra.mxu0 %v1010
    %1036 = vmatprep.subr.mxu0 0.0
    %1037 = vmatpush1.msra.mxu0 %v1011
    %1038 = vmatprep.subr.mxu0 0.0
    %1039 = vmatpush1.msra.mxu0 %v1012
    %1040 = vmatprep.subr.mxu0 0.0
    %1041 = vmatpush1.msra.mxu0 %v1013
    %1042 = vmatprep.subr.mxu0 0.0
    %1043 = vmatpush1.msra.mxu0 %v1014
    %1044 = vmatprep.subr.mxu0 0.0
    %1045 = vmatpush1.msra.mxu0 %v1015
    %1046 = vmatprep.subr.mxu0 0.0
    %1047 = vmatpush1.msra.mxu0 %v1016
    %1048 = vmatprep.subr.mxu0 0.0
    %1049 = vmatpush1.msra.mxu0 %v1017
    %1050 = vmatprep.subr.mxu0 0.0
    %1051 = vmatpush1.msra.mxu0 %v1018
    %1052 = vmatprep.subr.mxu0 0.0
    %1053 = vmatpush1.msra.mxu0 %v1019
    %1054 = vmatprep.subr.mxu0 0.0
    %1055 = vmatpush1.msra.mxu0 %v1020
    %1056 = vmatprep.subr.mxu0 0.0
    %1057 = vmatpush1.msra.mxu0 %v1021
    %1058 = vmatprep.subr.mxu0 0.0
    %1059 = vmatpush1.msra.mxu0 %v1022
    %1060 = vmatprep.subr.mxu0 0.0
    %1061 = vmatpush1.msra.mxu0 %v1023
    %1062 = vmatprep.subr.mxu0 0.0
    %1063 = vmatpush1.msra.mxu0 %v1024
    %1064 = vmatprep.subr.mxu0 0.0
    %1065 = vmatpush1.msra.mxu0 0.0
    %1066 = vmatprep.subr.mxu0 0.0
    %1067 = vmatpush1.msra.mxu0 0.0
    %1068 = vmatprep.subr.mxu0 0.0
    %1069 = vmatpush1.msra.mxu0 0.0
    %1070 = vmatprep.subr.mxu0 0.0
    %1071 = vmatpush1.msra.mxu0 0.0
    %1072 = vmatprep.subr.mxu0 0.0
    %1073 = vmatpush1.msra.mxu0 0.0
    %1074 = vmatprep.subr.mxu0 0.0
    %1075 = vmatpush1.msra.mxu0 0.0
    %1076 = vmatprep.subr.mxu0 0.0
    %1077 = vmatpush1.msra.mxu0 0.0
    %1078 = vmatprep.subr.mxu0 0.0
    %1079 = vmatpush1.msra.mxu0 0.0
    %1080 = vmatprep.subr.mxu0 0.0
    %1081 = vmatpush1.msra.mxu0 0.0
    %1082 = vmatprep.subr.mxu0 0.0
    %1083 = vmatpush1.msra.mxu0 0.0
    %1084 = vmatprep.subr.mxu0 0.0
    %1085 = vmatpush1.msra.mxu0 0.0
    %1086 = vmatprep.subr.mxu0 0.0
    %1087 = vmatpush1.msra.mxu0 0.0
    %1088 = vmatprep.subr.mxu0 0.0
    %1089 = vmatpush1.msra.mxu0 0.0
    %1090 = vmatprep.subr.mxu0 0.0
    %1091 = vmatpush1.msra.mxu0 0.0
    %1092 = vmatprep.subr.mxu0 0.0
    %1093 = vmatpush1.msra.mxu0 0.0
    %1094 = vmatprep.subr.mxu0 0.0
    %1095 = vmatpush1.msra.mxu0 0.0
    %1096 = vmatprep.mubr.f32.mxu0 0.0
    %1097 = vmatmul.mubr.f32.gmra.mrb[0].mxu0 %v1007
    %v1098 = vpop.f32.mrb[0].mxu0
    %v1099 = vadd.f32 %v1030, %v1098
    %v1100 = vpop.f32.mrb[0].mxu0
    %1101 = vmatprep.mubr.f32.mxu0 0.0
    %1102 = vmatmul.mubr.f32.gmra.mrb[0].mxu0 %v1008
    %v1103 = vpop.f32.mrb[0].mxu0
    %v1104 = vadd.f32 %v1030, %v1103
    %v1105 = vpop.f32.mrb[0].mxu0
    %1106 = vdwg.mxu0
    %1107 = vst [vmem:[#allocation12] sm:$0xff] %v1099
    %1108 = vst [vmem:[#allocation12 + $0x8] sm:$0xff] %v1104
    // Predicated region
    $region54: #{tpu_custom_call.1} parent=1 // pred_check
      _
    $region55: #{tpu_custom_call.1} parent=1 // pred_check_branch
      %1110 = sbr.rel (0) target = $region57
    $region56: #{tpu_custom_call.1} parent=1 // pred_region
      %s1112 = ssub.s32 256, 256
      %1113 = vsyncadd [#allocation5], %s1112
      %s1114 = sshll.u32 [#allocation12], 4
      %s1115 = int_to_ptr.vmem [resolvable:$true] %s1114
      %1120 = dma.vmem_to_hbm [thread:$0]  %s1115, 256, %s8, [#allocation5], 128, 128, 8
    $region57: #{tpu_custom_call.1} parent=1 // pred_fallthru
      _
    // Predicated region
    $region58: #{tpu_custom_call.1} parent=1 // pred_check
      _
    $region59: #{tpu_custom_call.1} parent=1 // pred_check_branch
      %1122 = sbr.rel (0) target = $region61
    $region60: #{tpu_custom_call.1} parent=1 // pred_region
      %1123 = dma.done [#allocation5], 256
    $region61: #{tpu_custom_call.1} parent=1 // pred_fallthru
      _
    %1124 = vsyncpa [#allocation4], 1
    %1125 = vsyncpa [#allocation7], 1
    %1126 = vsyncpa [#allocation10], 1
    %1127 = vsyncpa [#allocation5], 1

</llo_original>
